<compile_context>
chip_gen: v5e
topology: v5e:2x2
jax: 0.10.0
libtpu: 0.0.40
codegen_flags: <defaults>
</compile_context>

<pallas_src>
import functools

import jax
import jax.numpy as jnp
from jax.experimental import pallas as pl
from jax.experimental.pallas import tpu as pltpu


# ----------------------------------------------------------------------------
# Pallas kernel: fused cosine-similarity cost volume, one (batch, HW-tile) step
# ----------------------------------------------------------------------------
def _correlation_kernel(x_ref, t_ref, o_ref, *, mxu_dtype):
    # x_ref: (C, HW_TILE)        image-feature tile (batch dim squeezed)
    # t_ref: (T_total, C)        text embeddings, already L2-normalized, resident
    # o_ref: (T_total, HW_TILE)  cosine-similarity cost-volume tile
    xb = x_ref[...]                                   # native dtype, no copy
    xf = xb.astype(jnp.float32)
    # F.normalize semantics along C: v / max(||v||, eps)  ==  v * rsqrt(max(||v||^2, eps^2))
    sumsq = jnp.sum(xf * xf, axis=0, keepdims=True)   # (1, HW_TILE), f32 VPU
    inv = jax.lax.rsqrt(jnp.maximum(sumsq, 1e-24))    # EUP slot, eps = 1e-12
    # (T, C) @ (C, HW_TILE) on the MXU, bf16 operands, f32 accumulation.
    prod = jnp.dot(t_ref[...].astype(mxu_dtype), xb.astype(mxu_dtype),
                   preferred_element_type=jnp.float32)
    # Scale-after-matmul: T x HW multiply instead of C x HW (far fewer VALU ops).
    o_ref[...] = (prod * inv).astype(o_ref.dtype)


def _pick_hw_tile(hw: int, cap: int = 2048) -> int:
    """Largest multiple of 128 that divides HW (capped); fall back to full HW."""
    best = 0
    t = 128
    while t <= min(hw, cap):
        if hw % t == 0:
            best = t
        t += 128
    return best if best > 0 else hw


def cost_volume(x_flat: jax.Array, text_flat: jax.Array, *, hw_tile: int = None,
                mxu_dtype=jnp.bfloat16, out_dtype=jnp.float32) -> jax.Array:
    """x_flat: (B, C, HW), text_flat: (T_total, C) unit-norm -> (B, T_total, HW)."""
    B, C, HW = x_flat.shape
    T, Ct = text_flat.shape
    assert Ct == C, f"text dim {Ct} must equal image channel dim {C}"

    if hw_tile is None:
        hw_tile = _pick_hw_tile(HW)
    assert HW % hw_tile == 0, f"hw_tile={hw_tile} must divide HW={HW}"
    grid = (B, HW // hw_tile)

    kernel = functools.partial(_correlation_kernel, mxu_dtype=mxu_dtype)

    bytes_accessed = (x_flat.size * x_flat.dtype.itemsize
                      + text_flat.size * text_flat.dtype.itemsize
                      + B * T * HW * jnp.dtype(out_dtype).itemsize)
    cost = pl.CostEstimate(
        flops=2 * B * T * C * HW + 3 * B * C * HW,   # matmul + norm/scale
        transcendentals=B * HW,                      # rsqrt per pixel
        bytes_accessed=bytes_accessed,
    )

    grid_spec = pltpu.PrefetchScalarGridSpec(
        num_scalar_prefetch=0,
        grid=grid,
        in_specs=[
            # image tile: batch squeezed, C on sublanes, HW tile on lanes
            pl.BlockSpec((pl.Squeezed(), C, hw_tile), lambda b, h: (b, 0, h)),
            # text: constant index_map -> stays VMEM-resident across the grid
            pl.BlockSpec((T, C), lambda b, h: (0, 0)),
        ],
        out_specs=pl.BlockSpec((pl.Squeezed(), T, hw_tile), lambda b, h: (b, 0, h)),
    )
    return pl.pallas_call(
        kernel,
        out_shape=jax.ShapeDtypeStruct((B, T, HW), out_dtype),
        grid_spec=grid_spec,
        compiler_params=pltpu.CompilerParams(
            dimension_semantics=("parallel", "parallel")),
        cost_estimate=cost,
    )(x_flat, text_flat)


# ----------------------------------------------------------------------------
# Predictor wrapper (glue in plain JAX)
# ----------------------------------------------------------------------------
class ObjCATSegPredictorPallas:
    """Synthetic-parameter JAX/Pallas port of ObjCATSegPredictor.forward."""

    def __init__(self, *, num_obj_classes, num_part_classes, num_specific_part_classes,
                 text_dim, prompt_channel=1, key=None):
        if key is None:
            key = jax.random.PRNGKey(0)
        k_obj, k_part, k_spec = jax.random.split(key, 3)

        def make_text(k, n_cls):
            # Deterministic stand-in for CLIP class_embeddings():
            # shape (T, P, C), L2-normalized along C once here at init time
            # (CLIP output is already unit-norm), so the kernel never
            # re-normalizes the text.
            t = jax.random.normal(k, (n_cls, prompt_channel, text_dim), jnp.float32)
            return t / jnp.linalg.norm(t, axis=-1, keepdims=True)

        # (num_classes, P, C), mirroring .permute(1, 0, 2) of class_embeddings.
        self.text_obj_features = make_text(k_obj, num_obj_classes)
        self.text_specific_part_features = make_text(k_spec, num_specific_part_classes)
        self.text_part_obj_features = make_text(k_part,
                                                num_part_classes + num_obj_classes)
        self.prompt_channel = prompt_channel
        self.text_dim = text_dim

    def forward(self, x, vis_guidance, *, hw_tile=None):
        """x: (B, C, H, W) CLIP image features (NCHW, as in PyTorch).
        vis_guidance: dict of appearance-guidance feature maps (NCHW)."""
        B, C, H, W = x.shape
        assert C == self.text_dim, "image channels must match text embedding dim"
        P = self.prompt_channel
        vis = [vis_guidance[k] for k in vis_guidance.keys()][::-1]  # same reversal

        # The batch `repeat` of the text embeddings is folded away: text is
        # shared across B, so it is passed to the kernel once, un-broadcast.
        t_obj = self.text_obj_features.reshape(-1, C)                 # (T_obj*P, C)
        t_spec = self.text_specific_part_features.reshape(-1, C)      # (T_spec*P, C)
        t_all = jnp.concatenate([t_obj, t_spec], axis=0)              # fused text
        n_obj = t_obj.shape[0]

        # Native layout: NCHW -> (B, C, HW) is a pure reshape (no transpose),
        # kept in x's native dtype (no f32 upcast in the wrapper).
        x_flat = x.reshape(B, C, H * W)

        cost = cost_volume(x_flat, t_all, hw_tile=hw_tile)  # (B, T_obj*P+T_spec*P, HW)

        def to_cat_seg(cost_flat, T):
            # (B, T*P, HW) -> (B, P, T, H, W)
            if P == 1:
                return cost_flat.reshape(B, 1, T, H, W)   # no transpose needed
            return jnp.transpose(cost_flat.reshape(B, T, P, H, W), (0, 2, 1, 3, 4))

        obj_cost = to_cat_seg(cost[:, :n_obj], self.text_obj_features.shape[0])
        specific_part_cost = to_cat_seg(cost[:, n_obj:],
                                        self.text_specific_part_features.shape[0])

        # TODO(synk): the Aggregator's cost-volume refinement (swin attention
        # layers, class-aggregation, guidance-conv decoder, upsampling head)
        # is an external sub-module not defined in this file; only the
        # correlation (cost-volume) hot path is computed here.
        obj_out = obj_cost
        costs = {"obj": obj_cost, "specific_part": specific_part_cost, "vis": vis}
        return obj_out, costs


# ----------------------------------------------------------------------------
# Demo
# ----------------------------------------------------------------------------
if __name__ == "__main__":
    key = jax.random.PRNGKey(0)
    k_x, k_v1, k_v2, k_params = jax.random.split(key, 4)

    B, C, H, W = 2, 32, 16, 16          # small CLIP image-feature map (NCHW)
    num_obj_classes = 8
    num_part_classes = 8
    num_specific_part_classes = 16
    text_dim = C                         # correlation contracts over C
    prompt_channel = 1                   # prompt_ensemble_type == 'single'

    predictor = ObjCATSegPredictorPallas(
        num_obj_classes=num_obj_classes,
        num_part_classes=num_part_classes,
        num_specific_part_classes=num_specific_part_classes,
        text_dim=text_dim,
        prompt_channel=prompt_channel,
        key=k_params,
    )

    x = jax.random.normal(k_x, (B, C, H, W), jnp.float32)
    vis_guidance = {
        "res3": jax.random.normal(k_v1, (B, 16, 32, 32), jnp.float32),
        "res2": jax.random.normal(k_v2, (B, 8, 64, 64), jnp.float32),
    }

    # hw_tile=128 exercises the (B, HW-tile) grid: grid = (2, 2)
    obj_out, costs = predictor.forward(x, vis_guidance, hw_tile=128)
    jax.block_until_ready(obj_out)
    jax.block_until_ready(costs["specific_part"])

    # sanity: compare against a pure-JAX f32 reference of the correlation
    # (bf16 MXU feed -> relaxed tolerance, values are cosine similarities in [-1, 1])
    def ref_cost(x_nchw, text_tpc):
        xn = x_nchw / jnp.linalg.norm(x_nchw, axis=1, keepdims=True)
        tn = text_tpc / jnp.linalg.norm(text_tpc, axis=-1, keepdims=True)
        return jnp.einsum("bchw,tpc->bpthw", xn, tn)

    ref_obj = ref_cost(x, predictor.text_obj_features)
    ref_spec = ref_cost(x, predictor.text_specific_part_features)
    assert jnp.allclose(obj_out, ref_obj, atol=2e-2, rtol=2e-2), \
        "obj cost volume mismatch"
    assert jnp.allclose(costs["specific_part"], ref_spec, atol=2e-2, rtol=2e-2), \
        "specific_part cost volume mismatch"

    print("KERNEL_OK")
</pallas_src>

<mosaic_0001>
module attributes {stable_mosaic.version = 11 : i64} {
  func.func @_correlation_kernel(%arg0: i32, %arg1: i32, %arg2: memref<1x32x128xf32, #tpu.memory_space<vmem>>, %arg3: memref<24x32xf32, #tpu.memory_space<vmem>>, %arg4: memref<1x24x128xf32, #tpu.memory_space<vmem>>) attributes {dimension_semantics = [#tpu.dimension_semantics<parallel>, #tpu.dimension_semantics<parallel>], iteration_bounds = array<i64: 2, 2>, scalar_prefetch = 0 : i64, scratch_operands = 0 : i64, tpu.core_type = #tpu.core_type<tc>, window_params = [{transform_indices = @transform_0, window_bounds = array<i64: 1, 32, 128>}, {pipeline_mode = #tpu.pipeline_mode<synchronous>, transform_indices = @transform_1, window_bounds = array<i64: 24, 32>}, {transform_indices = @transform_2, window_bounds = array<i64: 1, 24, 128>}]} {
    %c0 = arith.constant 0 : index
    %c0_0 = arith.constant 0 : index
    %c0_1 = arith.constant 0 : index
    %0 = vector.load %arg2[%c0, %c0_0, %c0_1] : memref<1x32x128xf32, #tpu.memory_space<vmem>>, vector<1x32x128xf32>
    %1 = vector.shape_cast %0 : vector<1x32x128xf32> to vector<32x128xf32>
    %2 = arith.mulf %1, %1 : vector<32x128xf32>
    %cst = arith.constant dense<0.000000e+00> : vector<128xf32>
    %3 = vector.multi_reduction <add>, %2, %cst [0] : vector<32x128xf32> to vector<128xf32>
    %4 = vector.shape_cast %3 : vector<128xf32> to vector<1x128xf32>
    %cst_2 = arith.constant 1.000000e-24 : f32
    %5 = vector.broadcast %cst_2 : f32 to vector<1x128xf32>
    %6 = arith.maximumf %4, %5 : vector<1x128xf32>
    %7 = math.rsqrt %6 : vector<1x128xf32>
    %c0_3 = arith.constant 0 : index
    %c0_4 = arith.constant 0 : index
    %8 = vector.load %arg3[%c0_3, %c0_4] : memref<24x32xf32, #tpu.memory_space<vmem>>, vector<24x32xf32>
    %9 = arith.truncf %8 : vector<24x32xf32> to vector<24x32xbf16>
    %10 = arith.truncf %1 : vector<32x128xf32> to vector<32x128xbf16>
    %cst_5 = arith.constant dense<0.000000e+00> : vector<24x128xf32>
    %11 = tpu.matmul %9, %10, %cst_5 {dimension_numbers = #tpu.dot_dimension_numbers<[1], [0], [0], [1], [0, 0, 1, 1], [], []>} : vector<24x32xbf16>, vector<32x128xbf16>, vector<24x128xf32> -> vector<24x128xf32>
    %12 = vector.broadcast %7 : vector<1x128xf32> to vector<24x128xf32>
    %13 = arith.mulf %11, %12 : vector<24x128xf32>
    %c0_6 = arith.constant 0 : index
    %c0_7 = arith.constant 0 : index
    %c0_8 = arith.constant 0 : index
    %14 = vector.load %arg4[%c0_6, %c0_7, %c0_8] : memref<1x24x128xf32, #tpu.memory_space<vmem>>, vector<1x24x128xf32>
    %15 = vector.shape_cast %14 : vector<1x24x128xf32> to vector<24x128xf32>
    %16 = vector.shape_cast %13 : vector<24x128xf32> to vector<1x24x128xf32>
    tpu.vector_store %arg4[%c0_6, %c0_7, %c0_8], %16 {strides = array<i32>} : memref<1x24x128xf32, #tpu.memory_space<vmem>>, vector<1x24x128xf32>,
    return
  }
  func.func @transform_0(%arg0: i32, %arg1: i32) -> (i32, i32, i32) {
    %c0_i32 = arith.constant 0 : i32
    %c0_i32_0 = arith.constant 0 : i32
    return %arg0, %c0_i32, %arg1 : i32, i32, i32
  }
  func.func @transform_1(%arg0: i32, %arg1: i32) -> (i32, i32) {
    %c0_i32 = arith.constant 0 : i32
    %c0_i32_0 = arith.constant 0 : i32
    %c0_i32_1 = arith.constant 0 : i32
    return %c0_i32, %c0_i32_0 : i32, i32
  }
  func.func @transform_2(%arg0: i32, %arg1: i32) -> (i32, i32, i32) {
    %c0_i32 = arith.constant 0 : i32
    %c0_i32_0 = arith.constant 0 : i32
    return %arg0, %c0_i32, %arg1 : i32, i32, i32
  }
}

</mosaic_0001>

<llo_original>
// kernel: tpu_custom_call.1
$region0: #{tpu_custom_call.1}
  #allocation0 [shape = 'u32[]', space=smem, size = 0x4, offset = 0x4, fixed_abs, tag = 'smem constant byte address 0x4 - core index']
  #allocation1 [shape = 'u32[72,128]{1,0:T(1,128)}', space=vmem, size = 0x9000, scoped, tag = 'internal scratch']
  %s0 = inlined_call_operand.hbm [shape: f32[2,32,256], index: 0, kind: input, shape index: {}]
  %s1 = inlined_call_operand.hbm [shape: f32[24,32], index: 1, kind: input, shape index: {}]
  %s2 = inlined_call_operand.hbm [shape: f32[2,24,256], index: 2, kind: output, shape index: {}]
  %s3 = sld [smem:[#allocation0]]
  $region49: #{tpu_custom_call.1} parent=0
    _
  %s5 = ssub.s32 1, %s3
  %s6 = scalar_select 0, %s5, %s3
  $region1: #{tpu_custom_call.1} parent=0
    #allocation2 [shape = 'u8[32768]{0}', space=vmem, size = 0x8000, scoped, tag = 'input window, operand 0']
    #allocation3 [shape = 's32[2]{0}', space=sflag, size = 0x8, scoped, tag = 'scoped memory for tpu_custom_call.1']
    #allocation4 [shape = 's32[2]{0}', space=sflag, size = 0x8, scoped, tag = 'scoped memory for tpu_custom_call.1']
    #allocation5 [shape = 'u8[12288]{0}', space=vmem, size = 0x3000, scoped, tag = 'input window, operand 1, single buffered']
    #allocation6 [shape = 's32[1]{0}', space=sflag, size = 0x4, scoped, tag = 'scoped memory for tpu_custom_call.1']
    #allocation7 [shape = 'u8[24576]{0}', space=vmem, size = 0x6000, scoped, tag = 'output window, operand 0']
    %7 = vsyncpa [#allocation3], 0
    %s8 = scalar_lea.sflag [#allocation3], 1
    %9 = vsyncpa %s8, 0
    %10 = vsyncpa [#allocation6], 0
    %11 = vsyncpa [#allocation4], 0
    %s12 = scalar_lea.sflag [#allocation4], 1
    %13 = vsyncpa %s12, 0
    loop: start=0, step=1, limit=6
    $region2: #{tpu_custom_call.1} parent=1 // loop_pre_header
      _
    $region3: #{tpu_custom_call.1} parent=1 // loop_header
      %s15 = sphi 0, %s19
      %p16 = scmp.ge.s32.totalorder %s15, 6
      %s22 = sphi 0, %s34
      %s23 = sphi 0, %s30
      %s24 = sphi 0, %s22
      %s25 = sphi 0, %s23
      %s26 = sphi 0, %s24
      %s27 = sphi 0, %s25
      %s39 = sphi 0, %s41
      %s42 = sphi 0, %s39
      %s43 = sphi 0, %s42
      %s59 = sphi 0, %s43
      %s63 = sphi 0, %s63
      %s65 = sphi 0, %s63
      %s66 = sphi 0, %s65
      %s80 = sphi 0, %s66
      %s88 = sphi 0, %s90
      %s91 = sphi 0, %s88
      %s92 = sphi 0, %s91
      %s108 = sphi 0, %s92
    $region4: #{tpu_custom_call.1} parent=1 // loop_header_branch
      %18 = sbr.rel (%p16) target = $region8
    $region5: #{tpu_custom_call.1} parent=1 // loop_body
      %s20 = ssub.s32 %s15, 1
      %s21 = ssub.s32 %s15, 2
      %s28 = sadd.s32 1, %s23
      %p29 = scmp.ge.s32.totalorder %s28, 2
      %s30 = scalar_select %p29, 0, %s28
      %s31 = sadd.s32 1, %s22
      %s32 = scalar_select %p29, %s31, %s22
      %p33 = scmp.ge.s32.totalorder %s32, 2
      %s34 = scalar_select %p33, 0, %s32
      %s35 = ssub.s32 %s22, %s34
      %s36 = ssub.s32 %s23, %s30
      %s37 = sor.u32 %s35, %s36
      %p38 = scmp.eq.s32.totalorder %s37, 0
      %s40 = sadd.s32 %s39, 1
      %s41 = scalar_select %p38, %s39, %s40
      %p44 = pneg %p38
      %p45 = scmp.eq.s32.totalorder %s15, 3
      %p46 = por %p44, %p45
      %p47 = scmp.ne.s32.totalorder %s39, %s42
      %p48 = scmp.eq.s32.totalorder %s15, 0
      %p49 = por %p47, %p48
      %p50 = scmp.ne.s32.totalorder %s39, %s42
      %p51 = scmp.eq.s32.totalorder %s20, 3
      %p52 = por %p50, %p51
      %p53 = scmp.ne.s32.totalorder %s42, %s43
      %p54 = scmp.eq.s32.totalorder %s20, 0
      %p55 = por %p53, %p54
      %p56 = scmp.ne.s32.totalorder %s42, %s43
      %p57 = scmp.eq.s32.totalorder %s21, 3
      %p58 = por %p56, %p57
      %p60 = scmp.ne.s32.totalorder %s43, %s59
      %p61 = scmp.eq.s32.totalorder %s21, 0
      %p62 = por %p60, %p61
      %s64 = sadd.s32 %s63, 1
      %p67 = scmp.eq.s32.totalorder %s15, 3
      %p68 = scmp.ne.s32.totalorder %s63, %s65
      %p69 = scmp.eq.s32.totalorder %s15, 0
      %p70 = por %p68, %p69
      %p71 = scmp.ne.s32.totalorder %s63, %s65
      %p72 = scmp.eq.s32.totalorder %s20, 3
      %p73 = por %p71, %p72
      %p74 = scmp.ne.s32.totalorder %s65, %s66
      %p75 = scmp.eq.s32.totalorder %s20, 0
      %p76 = por %p74, %p75
      %p77 = scmp.ne.s32.totalorder %s65, %s66
      %p78 = scmp.eq.s32.totalorder %s21, 3
      %p79 = por %p77, %p78
      %p81 = scmp.ne.s32.totalorder %s66, %s80
      %p82 = scmp.eq.s32.totalorder %s21, 0
      %p83 = por %p81, %p82
      %s84 = ssub.s32 %s22, %s34
      %s85 = ssub.s32 %s23, %s30
      %s86 = sor.u32 %s84, %s85
      %p87 = scmp.eq.s32.totalorder %s86, 0
      %s89 = sadd.s32 %s88, 1
      %s90 = scalar_select %p87, %s88, %s89
      %p93 = pneg %p87
      %p94 = scmp.eq.s32.totalorder %s15, 3
      %p95 = por %p93, %p94
      %p96 = scmp.ne.s32.totalorder %s88, %s91
      %p97 = scmp.eq.s32.totalorder %s15, 0
      %p98 = por %p96, %p97
      %p99 = scmp.ne.s32.totalorder %s88, %s91
      %p100 = scmp.eq.s32.totalorder %s20, 3
      %p101 = por %p99, %p100
      %p102 = scmp.ne.s32.totalorder %s91, %s92
      %p103 = scmp.eq.s32.totalorder %s20, 0
      %p104 = por %p102, %p103
      %p105 = scmp.ne.s32.totalorder %s91, %s92
      %p106 = scmp.eq.s32.totalorder %s21, 3
      %p107 = por %p105, %p106
      %p109 = scmp.ne.s32.totalorder %s92, %s108
      %p110 = scmp.eq.s32.totalorder %s21, 0
      %p111 = por %p109, %p110
      %p112 = scmp.le.s32.totalorder 1, %s15
      %p113 = scmp.lt.s32.totalorder %s15, 5
      %p114 = pnand %p112, %p113
      %p115 = pneg %p114
      // Predicated region
      $region9: #{tpu_custom_call.1} parent=5 // pred_check
        _
      $region10: #{tpu_custom_call.1} parent=5 // pred_check_branch
        %117 = sbr.rel (%p114) target = $region12
      $region11: #{tpu_custom_call.1} parent=5 // pred_region
        %s118 = ssub.s32 %s15, 1
        // Predicated region
        $region13: #{tpu_custom_call.1} parent=11 // pred_check
          %p119 = pneg %p76
        $region14: #{tpu_custom_call.1} parent=11 // pred_check_branch
          %121 = sbr.rel (%p119) target = $region16
        $region15: #{tpu_custom_call.1} parent=11 // pred_region
          %123 = vsyncadd [#allocation6], 0
          %s124 = sshll.u32 %s1, 4
          %s125 = int_to_ptr.hbm [resolvable:$true] %s124
          %s126 = sshll.u32 [#allocation5], 4
          %s127 = int_to_ptr.vmem [resolvable:$true] %s126
          %132 = dma.hbm_to_vmem [thread:$0]  %s125, 384, %s127, [#allocation6], 128, 128, 8
        $region16: #{tpu_custom_call.1} parent=11 // pred_fallthru
          _
      $region12: #{tpu_custom_call.1} parent=5 // pred_fallthru
        _
      %p133 = scmp.lt.s32.totalorder %s15, 4
      // Predicated region
      $region17: #{tpu_custom_call.1} parent=5 // pred_check
        %p134 = pneg %p133
      $region18: #{tpu_custom_call.1} parent=5 // pred_check_branch
        %136 = sbr.rel (%p134) target = $region20
      $region19: #{tpu_custom_call.1} parent=5 // pred_region
        // Predicated region
        $region21: #{tpu_custom_call.1} parent=19 // pred_check
          %p137 = pneg %p49
        $region22: #{tpu_custom_call.1} parent=19 // pred_check_branch
          %139 = sbr.rel (%p137) target = $region24
        $region23: #{tpu_custom_call.1} parent=19 // pred_region
          %s140 = sand.u32 %s39, 1
          %s141 = scalar_lea.sflag [#allocation3], %s140
          %s142 = sand.u32 %s39, 1
          %s143 = smul.addr %s142, 32
          %s144 = scalar_lea.vmem [#allocation2], %s143
          %146 = vsyncadd %s141, 0
          %s147 = smul.addr %s22, 8
          %s148 = sadd.s32 %s23, %s147
          %s149 = smul.addr %s148, 8
          %s150 = scalar_lea.hbm %s0, %s149
          %s151 = sshll.u32 %s150, 4
          %s152 = int_to_ptr.hbm [resolvable:$true] %s151
          %s153 = sshll.u32 %s144, 4
          %s154 = int_to_ptr.vmem [resolvable:$true] %s153
          %159 = dma.hbm_to_vmem [thread:$0]  %s152, 512, %s154, %s141, 256, 128, 8
        $region24: #{tpu_custom_call.1} parent=19 // pred_fallthru
          _
      $region20: #{tpu_custom_call.1} parent=5 // pred_fallthru
        _
      %p160 = scmp.le.s32.totalorder 1, %s15
      %p161 = scmp.lt.s32.totalorder %s15, 5
      %p162 = pnand %p160, %p161
      %p163 = pneg %p162
      // Predicated region
      $region25: #{tpu_custom_call.1} parent=5 // pred_check
        _
      $region26: #{tpu_custom_call.1} parent=5 // pred_check_branch
        %165 = sbr.rel (%p162) target = $region28
      $region27: #{tpu_custom_call.1} parent=5 // pred_region
        %s166 = ssub.s32 %s15, 1
        %s167 = sand.u32 %s42, 1
        %s168 = scalar_lea.sflag [#allocation3], %s167
        %s169 = sand.u32 %s42, 1
        %s170 = smul.addr %s169, 32
        %s171 = scalar_lea.vmem [#allocation2], %s170
        // Predicated region
        $region29: #{tpu_custom_call.1} parent=27 // pred_check
          %p172 = pneg %p55
        $region30: #{tpu_custom_call.1} parent=27 // pred_check_branch
          %174 = sbr.rel (%p172) target = $region32
        $region31: #{tpu_custom_call.1} parent=27 // pred_region
          %176 = dma.done %s168, 512
        $region32: #{tpu_custom_call.1} parent=27 // pred_fallthru
          _
        // Predicated region
        $region33: #{tpu_custom_call.1} parent=27 // pred_check
          %p177 = pneg %p76
        $region34: #{tpu_custom_call.1} parent=27 // pred_check_branch
          %179 = sbr.rel (%p177) target = $region36
        $region35: #{tpu_custom_call.1} parent=27 // pred_region
          %181 = dma.done [#allocation6], 384
        $region36: #{tpu_custom_call.1} parent=27 // pred_fallthru
          _
        %s182 = sand.u32 %s42, 1
        %s183 = scalar_lea.sflag [#allocation3], %s182
        %s184 = sand.u32 %s42, 1
        %s185 = smul.addr %s184, 32
        %s186 = scalar_lea.vmem [#allocation2], %s185
        %p187 = pneg %p55
        %p188 = pneg %p52
        %p189 = pneg %p76
        %p190 = pneg %p73
        %p191 = pneg %p104
        %p192 = pneg %p101
        %s193 = sand.u32 %s91, 1
        %s194 = scalar_lea.sflag [#allocation4], %s193
        %s195 = sand.u32 %s91, 1
        %s196 = smul.addr %s195, 24
        %s197 = scalar_lea.vmem [#allocation7], %s196
        %v199 = vld [vmem:[%s171] sm:$0xff]
        %v200 = vld [vmem:[%s171 + $0x8] sm:$0xff]
        %v201 = vld [vmem:[%s171 + $0x10] sm:$0xff]
        %v202 = vld [vmem:[%s171 + $0x18] sm:$0xff]
        %v203 = vmul.f32 %v199, %v199
        %v204 = vmul.f32 %v200, %v200
        %v205 = vmul.f32 %v201, %v201
        %v206 = vmul.f32 %v202, %v202
        %v207 = vadd.f32 %v203, %v204
        %v208 = vadd.f32 %v207, %v205
        %v209 = vadd.f32 %v208, %v206
        %v210 = vrot.slane %v209, 4
        %v211 = vadd.f32 %v209, %v210
        %v212 = vrot.slane %v211, 2
        %v213 = vadd.f32 %v211, %v212
        %v214 = vrot.slane %v213, 1
        %v215 = vadd.f32 %v213, %v214
        %v216 = vmax.f32 %v215, 1e-24
        %v217 = vrsqrt.pop %v216
        %v218 = vmul.f32 %v217, %v216
        %v219 = vmul.f32 %v218, %v217
        %v220 = vmul.f32 0.5, %v219
        %v221 = vsub.f32 1.5, %v220
        %v222 = vmul.f32 %v217, %v221
        %vm223 = vweird.f32 %v216
        %vm224 = vweird.f32 %v217
        %vm225 = vmor %vm223, %vm224
        %v226 = vsel %vm225, %v217, %v222
        %v227 = vld [vmem:[#allocation5] sm:$0xff]
        %v228 = vld [vmem:[#allocation5 + $0x8] sm:$0xff]
        %v229 = vld [vmem:[#allocation5 + $0x10] sm:$0xff]
        %v230 = vpack.c.bf16 %v228, %v227
        %v231 = vpack.c.bf16 %v229, %v229
        %v232 = vpack.c.bf16 %v200, %v199
        %v233 = vpack.c.bf16 %v202, %v201
        %vm234 = vcmask 261120
        %v236 = vsel %vm234, %v230, 0
        %v239 = vsel %vm234, %v231, 0
        %241 = vmatpush.bf16.msra.mxu0 0
        %242 = vmatpush.bf16.msra.mxu0 0
        %243 = vmatpush.bf16.msra.mxu0 0
        %244 = vmatpush.bf16.msra.mxu0 0
        %245 = vmatpush.bf16.msra.mxu0 0
        %246 = vmatpush.bf16.msra.mxu0 0
        %247 = vmatpush.bf16.msra.mxu0 %v233
        %248 = vmatpush.bf16.msra.mxu0 %v232
        %249 = vmatmul.bf16.gmra.mxu0 %v236
        %v250 = vpop.f32.mrf.mxu0
        %v251 = vadd.f32 0.0, %v250
        %v252 = vpop.f32.mrf.mxu0
        %v253 = vadd.f32 0.0, %v252
        %254 = vmatmul.bf16.gmra.mxu0 %v239
        %v255 = vpop.f32.mrf.mxu0
        %v256 = vadd.f32 0.0, %v255
        %v257 = vpop.f32.mrf.mxu0
        %258 = vdwg.mxu0
        %v259 = vmul.f32 %v251, %v226
        %v260 = vmul.f32 %v253, %v226
        %v261 = vmul.f32 %v256, %v226
        %262 = vst [vmem:[%s197] sm:$0xff] %v259
        %263 = vst [vmem:[%s197 + $0x8] sm:$0xff] %v260
        %264 = vst [vmem:[%s197 + $0x10] sm:$0xff] %v261
        %s265 = sand.u32 %s91, 1
        %s266 = scalar_lea.sflag [#allocation4], %s265
        %s267 = sand.u32 %s91, 1
        %s268 = smul.addr %s267, 24
        %s269 = scalar_lea.vmem [#allocation7], %s268
        // Predicated region
        $region37: #{tpu_custom_call.1} parent=27 // pred_check
          %p270 = pneg %p101
        $region38: #{tpu_custom_call.1} parent=27 // pred_check_branch
          %272 = sbr.rel (%p270) target = $region40
        $region39: #{tpu_custom_call.1} parent=27 // pred_region
          %274 = vsyncadd %s266, 0
          %s275 = smul.addr %s24, 6
          %s276 = sadd.s32 %s25, %s275
          %s277 = smul.addr %s276, 8
          %s278 = scalar_lea.hbm %s2, %s277
          %s279 = sshll.u32 %s269, 4
          %s280 = int_to_ptr.vmem [resolvable:$true] %s279
          %s281 = sshll.u32 %s278, 4
          %s282 = int_to_ptr.hbm [resolvable:$true] %s281
          %287 = dma.vmem_to_hbm [thread:$0]  %s280, 384, %s282, %s266, 128, 256, 8
        $region40: #{tpu_custom_call.1} parent=27 // pred_fallthru
          _
      $region28: #{tpu_custom_call.1} parent=5 // pred_fallthru
        _
      %p288 = scmp.le.s32.totalorder 2, %s15
      // Predicated region
      $region41: #{tpu_custom_call.1} parent=5 // pred_check
        %p289 = pneg %p288
      $region42: #{tpu_custom_call.1} parent=5 // pred_check_branch
        %291 = sbr.rel (%p289) target = $region44
      $region43: #{tpu_custom_call.1} parent=5 // pred_region
        %s292 = ssub.s32 %s15, 2
        // Predicated region
        $region45: #{tpu_custom_call.1} parent=43 // pred_check
          %p293 = pneg %p107
        $region46: #{tpu_custom_call.1} parent=43 // pred_check_branch
          %295 = sbr.rel (%p293) target = $region48
        $region47: #{tpu_custom_call.1} parent=43 // pred_region
          %s296 = sand.u32 %s92, 1
          %s297 = scalar_lea.sflag [#allocation4], %s296
          %s298 = sand.u32 %s92, 1
          %s299 = smul.addr %s298, 24
          %s300 = scalar_lea.vmem [#allocation7], %s299
          %302 = dma.done %s297, 384
        $region48: #{tpu_custom_call.1} parent=43 // pred_fallthru
          _
      $region44: #{tpu_custom_call.1} parent=5 // pred_fallthru
        _
    $region6: #{tpu_custom_call.1} parent=1 // loop_footer
      %s19 = sadd.s32 1, %s15
    $region7: #{tpu_custom_call.1} parent=1 // loop_footer_branch
      %14 = sbr.rel target = $region3
    $region8: #{tpu_custom_call.1} parent=1 // loop_exit
      _
    %303 = vsyncpa [#allocation3], 1
    %s304 = scalar_lea.sflag [#allocation3], 1
    %305 = vsyncpa %s304, 1
    %306 = vsyncpa [#allocation6], 1
    %307 = vsyncpa [#allocation4], 1
    %s308 = scalar_lea.sflag [#allocation4], 1
    %309 = vsyncpa %s308, 1

</llo_original>
